<compile_context>
chip_gen: v6e
topology: v6e:2x2x1
jax: 0.10.0
libtpu: 0.0.40
codegen_flags: <defaults>
</compile_context>

<pallas_src>
import functools

import jax
import jax.numpy as jnp
from jax import lax
from jax.experimental import pallas as pl
from jax.experimental.pallas import tpu as pltpu


def _round_up(x, m):
    return (x + m - 1) // m * m


# ----------------------------------------------------------------------------
# VMEM policy (review #4 / #6 / #7)
# ----------------------------------------------------------------------------
@functools.lru_cache(maxsize=None)
def _vmem_budget_bytes():
    """~75% of this generation's per-core VMEM (128 MiB v5e/v6e, 64 MiB v7x).
    Conservative 64 MiB assumption if the trace-time query is unavailable."""
    try:
        cap = int(pltpu.get_tpu_info().vmem_capacity_bytes)
    except Exception:
        cap = 64 * 2**20
    return int(0.75 * cap)


def _default_c_tile(c_out):
    """Largest divisor of C_out up to the 256-wide MXU (review #8)."""
    for t in (256, 128, 64, 32, 16, 8):
        if c_out % t == 0:
            return min(t, c_out)
    raise ValueError("C_out must be a multiple of 8")


def _pick_e_tile(e_pad, K, c_tile, budget_bytes):
    """Largest lane-aligned E tile whose pipeline working set fits the budget.
    e_tile == e_pad keeps the whole slab VMEM-resident (fetched once per batch
    element); smaller tiles stream the slab (the v7x deep-layer path)."""
    def working_set(e_tile):
        slab = 2 * K * e_tile * 2              # double-buffered bf16 slab tile
        wgt = 2 * c_tile * K * 2               # double-buffered bf16 weight tile
        out_res = 2 * 2 * c_tile * e_pad * 2   # resident bf16 out + residual buffers
        scratch = c_tile * e_pad * 4           # f32 pre-norm accumulator
        return slab + wgt + out_res + scratch

    candidates = [e_pad] + [t for t in (16384, 8192, 4096, 2048, 1024, 512, 256, 128)
                            if t < e_pad and e_pad % t == 0]
    for t in candidates:
        if working_set(t) <= budget_bytes:
            return t
    return 128


# ----------------------------------------------------------------------------
# Pallas kernel: [1x5 conv as MXU matmul] streamed over E tiles, then fused
# InstanceNorm + (optional residual) + ReLU in a finalize pass.
# ----------------------------------------------------------------------------
def _mesh_conv_body(sym_ref, w_ref, res_ref, o_ref, y_ref, *, e_true, e_tile, eps):
    # sym_ref: (1, K, e_tile) bf16 slab tile; w_ref: (c_tile, K) bf16 weights;
    # res_ref: (1, c_tile, E_pad) bf16 residual (or None); o_ref: (1, c_tile, E_pad) bf16;
    # y_ref:   (c_tile, E_pad) f32 pre-normalization accumulator (VMEM scratch).
    e_idx = pl.program_id(2)

    # Phase 1: MXU matmul for this E tile (bf16 inputs, f32 accumulation).
    y_tile = jnp.dot(w_ref[...], sym_ref[0], preferred_element_type=jnp.float32)
    start = pl.multiple_of(e_idx * e_tile, 128)
    y_ref[:, pl.ds(start, e_tile)] = y_tile

    # Phase 2 (last E tile): InstanceNorm2d(affine=False) over the TRUE edge count,
    # residual add, ReLU, single bf16 store.  Padded lanes of y are exact zeros
    # (zero-padded slab, no bias), so no mask is needed — only a static correction
    # of the pad-lane (0 - mean)^2 terms in the two-pass variance.
    @pl.when(e_idx == pl.num_programs(2) - 1)
    def _finalize():
        y = y_ref[...]                                        # (c_tile, E_pad) f32
        n_pad = y.shape[-1] - e_true
        inv_n = 1.0 / e_true
        mean = jnp.sum(y, axis=-1, keepdims=True) * inv_n
        d = y - mean
        sq = jnp.sum(d * d, axis=-1, keepdims=True)
        if n_pad:
            sq = sq - n_pad * (mean * mean)                   # remove pad-lane terms exactly
        inv_std = lax.rsqrt(jnp.maximum(sq * inv_n, 0.0) + eps)
        out = d * inv_std
        if res_ref is not None:                               # residual branch (conv2 blocks)
            out = out + res_ref[0].astype(jnp.float32)
        o_ref[0] = jnp.maximum(out, 0.0).astype(o_ref.dtype)  # ReLU, bf16 store


def _kernel_no_res(sym_ref, w_ref, o_ref, y_ref, *, e_true, e_tile, eps):
    _mesh_conv_body(sym_ref, w_ref, None, o_ref, y_ref, e_true=e_true, e_tile=e_tile, eps=eps)


def _kernel_with_res(sym_ref, w_ref, res_ref, o_ref, y_ref, *, e_true, e_tile, eps):
    _mesh_conv_body(sym_ref, w_ref, res_ref, o_ref, y_ref, e_true=e_true, e_tile=e_tile, eps=eps)


def mesh_conv_in_relu(sym, w_packed, e_true, residual=None, *, c_tile=None, eps=1e-5):
    """sym: (B, K, E_pad) bf16 packed neighborhood slab (K = 5*C_in, zero-padded
    beyond e_true); w_packed: (C_out, K) bf16; residual: (B, C_out, E_pad) or None.
    Returns (B, C_out, E_pad) bf16 = relu(InstanceNorm(conv(sym)) [+ residual]).

    INVARIANT: lanes >= e_true of the returned array are unspecified (post-norm
    values in the padded region); callers must slice to e_true before consuming
    (down_conv_forward does, and build_sym_slab re-zero-pads for the next layer)."""
    B, K, E_pad = sym.shape
    C_out = w_packed.shape[0]
    if c_tile is None:
        c_tile = _default_c_tile(C_out)
    assert C_out % c_tile == 0 and c_tile % 8 == 0
    assert E_pad % 128 == 0 and 0 < e_true <= E_pad

    budget = _vmem_budget_bytes()
    # Leave ~25% of the scoped limit for compiler temporaries / spills.
    e_tile = _pick_e_tile(E_pad, K, c_tile, int(0.75 * budget))
    grid = (B, C_out // c_tile, E_pad // e_tile)

    in_specs = [
        # Slab tile: when e_tile == E_pad its block index only changes with b, so
        # it is fetched exactly once per batch element and reused across C tiles.
        pl.BlockSpec((1, K, e_tile), lambda b, c, e: (b, 0, e)),
        pl.BlockSpec((c_tile, K), lambda b, c, e: (c, 0)),
    ]
    args = [sym, w_packed]
    if residual is not None:
        in_specs.append(pl.BlockSpec((1, c_tile, E_pad), lambda b, c, e: (b, c, 0)))
        args.append(residual)
        kernel = functools.partial(_kernel_with_res, e_true=e_true, e_tile=e_tile, eps=eps)
    else:
        kernel = functools.partial(_kernel_no_res, e_true=e_true, e_tile=e_tile, eps=eps)

    return pl.pallas_call(
        kernel,
        out_shape=jax.ShapeDtypeStruct((B, C_out, E_pad), jnp.bfloat16),
        grid=grid,
        in_specs=in_specs,
        out_specs=pl.BlockSpec((1, c_tile, E_pad), lambda b, c, e: (b, c, 0)),
        scratch_shapes=[pltpu.VMEM((c_tile, E_pad), jnp.float32)],
        compiler_params=pltpu.CompilerParams(
            # Megacore shards only the batch axis (review #5): sharding the C axis
            # would duplicate the slab DMA on both TCs; the E axis carries the
            # resident-output reduction so it must stay "arbitrary".
            dimension_semantics=("parallel", "arbitrary", "arbitrary"),
            vmem_limit_bytes=budget,
        ),
    )(*args)


# ----------------------------------------------------------------------------
# Glue (XLA): neighborhood gather + symmetric functions
# ----------------------------------------------------------------------------
def build_sym_slab(x, gemm_edges, e_pad):
    """x: (B, C, >=E) edge features; gemm_edges: (B, E, 4) int32 1-ring indices
    (-1 = missing neighbor).  Returns (B, 5*C, e_pad) bf16:
    [f0, f1+f3, f2+f4, |f1-f3|, |f2-f4|] stacked on the contraction axis,
    zero-padded along E to a lane multiple (so padded matmul columns are exact 0)."""
    B, E = gemm_edges.shape[0], gemm_edges.shape[1]
    C = x.shape[1]
    x = x[:, :, :E].astype(jnp.float32)                               # drop lane padding
    edge_ids = jnp.broadcast_to(jnp.arange(E, dtype=jnp.int32)[None, :, None], (B, E, 1))
    Gi = jnp.concatenate([edge_ids, gemm_edges], axis=2) + 1          # (B, E, 5); -1 -> 0
    x_pad0 = jnp.concatenate([jnp.zeros((B, C, 1), x.dtype), x], axis=2)  # zero column @0
    f = jax.vmap(lambda xp, gi: xp[:, gi])(x_pad0, Gi)                # (B, C, E, 5)
    f0, f1, f2, f3, f4 = (f[..., k] for k in range(5))
    sym = jnp.concatenate(
        [f0, f1 + f3, f2 + f4, jnp.abs(f1 - f3), jnp.abs(f2 - f4)], axis=1)  # (B, 5C, E)
    pad = e_pad - E
    if pad:
        sym = jnp.pad(sym, ((0, 0), (0, 0), (0, pad)))
    return sym.astype(jnp.bfloat16)


def pack_conv_weight(w, b=None):
    """PyTorch Conv2d weight (C_out, C_in, 1, 5) -> (C_out, 5*C_in) bf16 with
    contraction index k*C_in + c.  The Conv2d bias is dropped on purpose: DownConv
    applies InstanceNorm2d(affine=False) right after the conv, which subtracts the
    per-channel mean, so a per-channel constant cancels exactly (review #3)."""
    C_out, C_in, _, k = w.shape
    wm = jnp.transpose(w[:, :, 0, :], (0, 2, 1)).reshape(C_out, k * C_in)
    return wm.astype(jnp.bfloat16)


# ----------------------------------------------------------------------------
# DownConv forward (pool=0)
# ----------------------------------------------------------------------------
def down_conv_forward(fe, gemm_edges, params, *, c_tile=None):
    """fe: (B, C_in, E, 1); gemm_edges: (B, E, 4) int32 (-1 = missing neighbor).
    Mirrors DownConv.forward with pool=0: returns (x2, before_pool=None)."""
    x = fe[..., 0]                                     # MeshConv: x.squeeze(-1)
    E = x.shape[2]
    e_pad = _round_up(E, 128)                          # lane-dense kernel output

    sym = build_sym_slab(x, gemm_edges, e_pad)
    x1 = mesh_conv_in_relu(sym, params["w1"], E, c_tile=c_tile)       # conv1 -> IN -> ReLU (bf16)
    x2 = x1
    for w in params["conv2"]:                          # residual blocks
        sym = build_sym_slab(x1, gemm_edges, e_pad)    # slices to E and re-zero-pads
        x2 = mesh_conv_in_relu(sym, w, E, residual=x1, c_tile=c_tile)  # conv->IN->+x1->ReLU
        x1 = x2
    # x2.squeeze(3) is implicit in the (B, C_out, E) layout.  Lanes >= E of the
    # kernel output are unspecified -> always slice before returning.
    return x2[:, :, :E].astype(jnp.float32), None      # pool=0 => before_pool=None


# ----------------------------------------------------------------------------
# Pure-JAX references for verification
# ----------------------------------------------------------------------------
def ref_forward(fe, gemm_edges, raw_weights, *, mirror_kernel=False, eps=1e-5):
    """PyTorch-equivalent reference.  mirror_kernel=True mirrors the kernel's
    rounding (bf16 matmul inputs, bf16 layer outputs, bias dropped — it cancels
    under InstanceNorm); False is the pure-f32 semantic reference with bias."""
    rb = (lambda a: a.astype(jnp.bfloat16).astype(jnp.float32)) if mirror_kernel else (lambda a: a)

    def gather(x):
        B, C, E = x.shape
        ids = jnp.broadcast_to(jnp.arange(E, dtype=jnp.int32)[None, :, None], (B, E, 1))
        Gi = jnp.concatenate([ids, gemm_edges], axis=2) + 1
        xp = jnp.concatenate([jnp.zeros((B, C, 1), x.dtype), x], axis=2)
        return jax.vmap(lambda a, g: a[:, g])(xp, Gi)                 # (B, C, E, 5)

    def mesh_conv(x, w, b):
        f = gather(x)
        f0, f1, f2, f3, f4 = (f[..., t] for t in range(5))
        sym = jnp.stack([f0, f1 + f3, f2 + f4, jnp.abs(f1 - f3), jnp.abs(f2 - f4)], axis=1)
        wk = jnp.transpose(w[:, :, 0, :], (0, 2, 1))                  # (C_out, 5, C_in)
        y = jnp.einsum("okc,bkce->boe", rb(wk), rb(sym))
        if not mirror_kernel:
            y = y + b[None, :, None]                                  # bias cancels under IN anyway
        return y

    def inorm(y):
        mean = y.mean(-1, keepdims=True)
        d = y - mean
        var = (d * d).mean(-1, keepdims=True)
        return d * lax.rsqrt(var + eps)

    x = fe[..., 0]
    w1, b1, conv2 = raw_weights
    x1 = rb(jax.nn.relu(inorm(mesh_conv(x, w1, b1))))
    x2 = x1
    for (w, b) in conv2:
        x2 = rb(jax.nn.relu(inorm(mesh_conv(x1, w, b)) + x1))
        x1 = x2
    return x2


# ----------------------------------------------------------------------------
if __name__ == "__main__":
    # Small shapes: E deliberately NOT a lane multiple (exercises the padded-lane
    # InstanceNorm correction) and gemm_edges include -1 entries (missing neighbors).
    B, C_in, C_out, E, BLOCKS = 2, 4, 16, 200, 1

    key = jax.random.PRNGKey(0)
    k_fe, k_gemm, k_drop, k_w1, k_b1, *k_blk = jax.random.split(key, 5 + 2 * BLOCKS)

    fe = jax.random.normal(k_fe, (B, C_in, E, 1), dtype=jnp.float32)
    gemm_edges = jax.random.randint(k_gemm, (B, E, 4), 0, E, dtype=jnp.int32)
    gemm_edges = jnp.where(jax.random.bernoulli(k_drop, 0.1, (B, E, 4)),
                           jnp.int32(-1), gemm_edges)

    # Conv2d(in, out, kernel=(1,5), bias=True) parameters (bias cancels under IN).
    w1 = 0.1 * jax.random.normal(k_w1, (C_out, C_in, 1, 5), dtype=jnp.float32)
    b1 = 0.1 * jax.random.normal(k_b1, (C_out,), dtype=jnp.float32)
    conv2_raw = []
    for i in range(BLOCKS):
        wi = 0.1 * jax.random.normal(k_blk[2 * i], (C_out, C_out, 1, 5), dtype=jnp.float32)
        bi = 0.1 * jax.random.normal(k_blk[2 * i + 1], (C_out,), dtype=jnp.float32)
        conv2_raw.append((wi, bi))

    params = {
        "w1": pack_conv_weight(w1, b1),
        "conv2": [pack_conv_weight(w, b) for (w, b) in conv2_raw],
    }

    fwd = jax.jit(down_conv_forward)                   # default c_tile (16 here), not 8
    x2, before_pool = fwd(fe, gemm_edges, params)
    x2 = jax.block_until_ready(x2)
    assert x2.shape == (B, C_out, E) and before_pool is None

    # Tight check: reference mirroring the kernel's bf16 roundings (inputs + outputs).
    # Tolerance ~2 bf16 ulps at |y|~4 covers rare accumulation-order rounding flips.
    ref_k = ref_forward(fe, gemm_edges, (w1, b1, conv2_raw), mirror_kernel=True)
    assert jnp.allclose(x2, ref_k, atol=7.5e-2, rtol=5e-2), \
        "mismatch vs kernel-rounding-mirrored reference"

    # Semantic check vs pure-f32 PyTorch math; tolerance reflects end-to-end bf16
    # storage/MXU rounding through two layers of conv + InstanceNorm + residual.
    ref_f = ref_forward(fe, gemm_edges, (w1, b1, conv2_raw), mirror_kernel=False)
    assert jnp.allclose(x2, ref_f, atol=2e-1, rtol=2e-1), "mismatch vs f32 reference"

    print("KERNEL_OK")
</pallas_src>

<mosaic_0001>
module attributes {stable_mosaic.version = 11 : i64} {
  func.func @_kernel_no_res(%arg0: i32, %arg1: i32, %arg2: i32, %arg3: memref<1x20x256xbf16, #tpu.memory_space<vmem>>, %arg4: memref<16x20xbf16, #tpu.memory_space<vmem>>, %arg5: memref<1x16x256xbf16, #tpu.memory_space<vmem>>, %arg6: memref<16x256xf32, #tpu.memory_space<vmem>>) attributes {dimension_semantics = [#tpu.dimension_semantics<parallel>, #tpu.dimension_semantics<arbitrary>, #tpu.dimension_semantics<arbitrary>], iteration_bounds = array<i64: 2, 1, 1>, scalar_prefetch = 0 : i64, scratch_operands = 1 : i64, tpu.core_type = #tpu.core_type<tc>, window_params = [{transform_indices = @transform_0, window_bounds = array<i64: 1, 20, 256>}, {transform_indices = @transform_1, window_bounds = array<i64: 16, 20>}, {transform_indices = @transform_2, window_bounds = array<i64: 1, 16, 256>}]} {
    %c0 = arith.constant 0 : index
    %c0_0 = arith.constant 0 : index
    %0 = vector.load %arg4[%c0, %c0_0] : memref<16x20xbf16, #tpu.memory_space<vmem>>, vector<16x20xbf16>
    %c0_1 = arith.constant 0 : index
    %c0_2 = arith.constant 0 : index
    %c0_3 = arith.constant 0 : index
    %1 = vector.load %arg3[%c0_1, %c0_2, %c0_3] : memref<1x20x256xbf16, #tpu.memory_space<vmem>>, vector<1x20x256xbf16>
    %2 = vector.shape_cast %1 : vector<1x20x256xbf16> to vector<20x256xbf16>
    %cst = arith.constant dense<0.000000e+00> : vector<16x256xf32>
    %3 = tpu.matmul %0, %2, %cst {dimension_numbers = #tpu.dot_dimension_numbers<[1], [0], [0], [1], [0, 0, 1, 1], [], []>} : vector<16x20xbf16>, vector<20x256xbf16>, vector<16x256xf32> -> vector<16x256xf32>
    %c256_i32 = arith.constant 256 : i32
    %4 = arith.muli %arg2, %c256_i32 : i32
    %5 = tpu.assume_multiple %4, 128 : i32
    %c0_4 = arith.constant 0 : index
    %6 = arith.index_cast %5 : i32 to index
    %7 = vector.load %arg6[%c0_4, %6] : memref<16x256xf32, #tpu.memory_space<vmem>>, vector<16x256xf32>
    tpu.vector_store %arg6[%c0_4, %6], %3 {strides = array<i32>} : memref<16x256xf32, #tpu.memory_space<vmem>>, vector<16x256xf32>,
    %c0_i32 = arith.constant 0 : i32
    %8 = arith.cmpi eq, %arg2, %c0_i32 : i32
    %9 = arith.extui %8 : i1 to i32
    %c0_i32_5 = arith.constant 0 : i32
    %10 = arith.cmpi ne, %9, %c0_i32_5 : i32
    scf.if %10 {
      %c0_6 = arith.constant 0 : index
      %c0_7 = arith.constant 0 : index
      %11 = vector.load %arg6[%c0_6, %c0_7] : memref<16x256xf32, #tpu.memory_space<vmem>>, vector<16x256xf32>
      %cst_8 = arith.constant dense<0.000000e+00> : vector<16xf32>
      %12 = vector.multi_reduction <add>, %11, %cst_8 [1] : vector<16x256xf32> to vector<16xf32>
      %13 = vector.shape_cast %12 : vector<16xf32> to vector<16x1xf32>
      %cst_9 = arith.constant 5.000000e-03 : f32
      %14 = vector.broadcast %cst_9 : f32 to vector<16x1xf32>
      %15 = arith.mulf %13, %14 : vector<16x1xf32>
      %16 = vector.broadcast %15 : vector<16x1xf32> to vector<16x256xf32>
      %17 = arith.subf %11, %16 : vector<16x256xf32>
      %18 = arith.mulf %17, %17 : vector<16x256xf32>
      %cst_10 = arith.constant dense<0.000000e+00> : vector<16xf32>
      %19 = vector.multi_reduction <add>, %18, %cst_10 [1] : vector<16x256xf32> to vector<16xf32>
      %20 = vector.shape_cast %19 : vector<16xf32> to vector<16x1xf32>
      %21 = arith.mulf %15, %15 : vector<16x1xf32>
      %cst_11 = arith.constant 5.600000e+01 : f32
      %22 = vector.broadcast %cst_11 : f32 to vector<16x1xf32>
      %23 = arith.mulf %22, %21 : vector<16x1xf32>
      %24 = arith.subf %20, %23 : vector<16x1xf32>
      %cst_12 = arith.constant 5.000000e-03 : f32
      %25 = vector.broadcast %cst_12 : f32 to vector<16x1xf32>
      %26 = arith.mulf %24, %25 : vector<16x1xf32>
      %cst_13 = arith.constant 0.000000e+00 : f32
      %27 = vector.broadcast %cst_13 : f32 to vector<16x1xf32>
      %28 = arith.maximumf %26, %27 : vector<16x1xf32>
      %cst_14 = arith.constant 9.99999974E-6 : f32
      %29 = vector.broadcast %cst_14 : f32 to vector<16x1xf32>
      %30 = arith.addf %28, %29 : vector<16x1xf32>
      %31 = math.rsqrt %30 : vector<16x1xf32>
      %32 = vector.broadcast %31 : vector<16x1xf32> to vector<16x256xf32>
      %33 = arith.mulf %17, %32 : vector<16x256xf32>
      %cst_15 = arith.constant 0.000000e+00 : f32
      %34 = vector.broadcast %cst_15 : f32 to vector<16x256xf32>
      %35 = arith.maximumf %33, %34 : vector<16x256xf32>
      %36 = arith.truncf %35 : vector<16x256xf32> to vector<16x256xbf16>
      %c0_16 = arith.constant 0 : index
      %c0_17 = arith.constant 0 : index
      %c0_18 = arith.constant 0 : index
      %37 = vector.load %arg5[%c0_16, %c0_17, %c0_18] : memref<1x16x256xbf16, #tpu.memory_space<vmem>>, vector<1x16x256xbf16>
      %38 = vector.shape_cast %37 : vector<1x16x256xbf16> to vector<16x256xbf16>
      %39 = vector.shape_cast %36 : vector<16x256xbf16> to vector<1x16x256xbf16>
      tpu.vector_store %arg5[%c0_16, %c0_17, %c0_18], %39 {strides = array<i32>} : memref<1x16x256xbf16, #tpu.memory_space<vmem>>, vector<1x16x256xbf16>,
    } else {
    }
    return
  }
  func.func @transform_0(%arg0: i32, %arg1: i32, %arg2: i32) -> (i32, i32, i32) {
    %c0_i32 = arith.constant 0 : i32
    %c0_i32_0 = arith.constant 0 : i32
    return %arg0, %c0_i32, %arg2 : i32, i32, i32
  }
  func.func @transform_1(%arg0: i32, %arg1: i32, %arg2: i32) -> (i32, i32) {
    %c0_i32 = arith.constant 0 : i32
    %c0_i32_0 = arith.constant 0 : i32
    return %arg1, %c0_i32 : i32, i32
  }
  func.func @transform_2(%arg0: i32, %arg1: i32, %arg2: i32) -> (i32, i32, i32) {
    %c0_i32 = arith.constant 0 : i32
    %c0_i32_0 = arith.constant 0 : i32
    return %arg0, %arg1, %c0_i32 : i32, i32, i32
  }
}

module attributes {stable_mosaic.version = 11 : i64} {
  func.func @_kernel_with_res(%arg0: i32, %arg1: i32, %arg2: i32, %arg3: memref<1x80x256xbf16, #tpu.memory_space<vmem>>, %arg4: memref<16x80xbf16, #tpu.memory_space<vmem>>, %arg5: memref<1x16x256xbf16, #tpu.memory_space<vmem>>, %arg6: memref<1x16x256xbf16, #tpu.memory_space<vmem>>, %arg7: memref<16x256xf32, #tpu.memory_space<vmem>>) attributes {dimension_semantics = [#tpu.dimension_semantics<parallel>, #tpu.dimension_semantics<arbitrary>, #tpu.dimension_semantics<arbitrary>], iteration_bounds = array<i64: 2, 1, 1>, scalar_prefetch = 0 : i64, scratch_operands = 1 : i64, tpu.core_type = #tpu.core_type<tc>, window_params = [{transform_indices = @transform_0, window_bounds = array<i64: 1, 80, 256>}, {transform_indices = @transform_1, window_bounds = array<i64: 16, 80>}, {transform_indices = @transform_2, window_bounds = array<i64: 1, 16, 256>}, {transform_indices = @transform_3, window_bounds = array<i64: 1, 16, 256>}]} {
    %c0 = arith.constant 0 : index
    %c0_0 = arith.constant 0 : index
    %0 = vector.load %arg4[%c0, %c0_0] : memref<16x80xbf16, #tpu.memory_space<vmem>>, vector<16x80xbf16>
    %c0_1 = arith.constant 0 : index
    %c0_2 = arith.constant 0 : index
    %c0_3 = arith.constant 0 : index
    %1 = vector.load %arg3[%c0_1, %c0_2, %c0_3] : memref<1x80x256xbf16, #tpu.memory_space<vmem>>, vector<1x80x256xbf16>
    %2 = vector.shape_cast %1 : vector<1x80x256xbf16> to vector<80x256xbf16>
    %cst = arith.constant dense<0.000000e+00> : vector<16x256xf32>
    %3 = tpu.matmul %0, %2, %cst {dimension_numbers = #tpu.dot_dimension_numbers<[1], [0], [0], [1], [0, 0, 1, 1], [], []>} : vector<16x80xbf16>, vector<80x256xbf16>, vector<16x256xf32> -> vector<16x256xf32>
    %c256_i32 = arith.constant 256 : i32
    %4 = arith.muli %arg2, %c256_i32 : i32
    %5 = tpu.assume_multiple %4, 128 : i32
    %c0_4 = arith.constant 0 : index
    %6 = arith.index_cast %5 : i32 to index
    %7 = vector.load %arg7[%c0_4, %6] : memref<16x256xf32, #tpu.memory_space<vmem>>, vector<16x256xf32>
    tpu.vector_store %arg7[%c0_4, %6], %3 {strides = array<i32>} : memref<16x256xf32, #tpu.memory_space<vmem>>, vector<16x256xf32>,
    %c0_i32 = arith.constant 0 : i32
    %8 = arith.cmpi eq, %arg2, %c0_i32 : i32
    %9 = arith.extui %8 : i1 to i32
    %c0_i32_5 = arith.constant 0 : i32
    %10 = arith.cmpi ne, %9, %c0_i32_5 : i32
    scf.if %10 {
      %c0_6 = arith.constant 0 : index
      %c0_7 = arith.constant 0 : index
      %11 = vector.load %arg7[%c0_6, %c0_7] : memref<16x256xf32, #tpu.memory_space<vmem>>, vector<16x256xf32>
      %cst_8 = arith.constant dense<0.000000e+00> : vector<16xf32>
      %12 = vector.multi_reduction <add>, %11, %cst_8 [1] : vector<16x256xf32> to vector<16xf32>
      %13 = vector.shape_cast %12 : vector<16xf32> to vector<16x1xf32>
      %cst_9 = arith.constant 5.000000e-03 : f32
      %14 = vector.broadcast %cst_9 : f32 to vector<16x1xf32>
      %15 = arith.mulf %13, %14 : vector<16x1xf32>
      %16 = vector.broadcast %15 : vector<16x1xf32> to vector<16x256xf32>
      %17 = arith.subf %11, %16 : vector<16x256xf32>
      %18 = arith.mulf %17, %17 : vector<16x256xf32>
      %cst_10 = arith.constant dense<0.000000e+00> : vector<16xf32>
      %19 = vector.multi_reduction <add>, %18, %cst_10 [1] : vector<16x256xf32> to vector<16xf32>
      %20 = vector.shape_cast %19 : vector<16xf32> to vector<16x1xf32>
      %21 = arith.mulf %15, %15 : vector<16x1xf32>
      %cst_11 = arith.constant 5.600000e+01 : f32
      %22 = vector.broadcast %cst_11 : f32 to vector<16x1xf32>
      %23 = arith.mulf %22, %21 : vector<16x1xf32>
      %24 = arith.subf %20, %23 : vector<16x1xf32>
      %cst_12 = arith.constant 5.000000e-03 : f32
      %25 = vector.broadcast %cst_12 : f32 to vector<16x1xf32>
      %26 = arith.mulf %24, %25 : vector<16x1xf32>
      %cst_13 = arith.constant 0.000000e+00 : f32
      %27 = vector.broadcast %cst_13 : f32 to vector<16x1xf32>
      %28 = arith.maximumf %26, %27 : vector<16x1xf32>
      %cst_14 = arith.constant 9.99999974E-6 : f32
      %29 = vector.broadcast %cst_14 : f32 to vector<16x1xf32>
      %30 = arith.addf %28, %29 : vector<16x1xf32>
      %31 = math.rsqrt %30 : vector<16x1xf32>
      %32 = vector.broadcast %31 : vector<16x1xf32> to vector<16x256xf32>
      %33 = arith.mulf %17, %32 : vector<16x256xf32>
      %c0_15 = arith.constant 0 : index
      %c0_16 = arith.constant 0 : index
      %c0_17 = arith.constant 0 : index
      %34 = vector.load %arg5[%c0_15, %c0_16, %c0_17] : memref<1x16x256xbf16, #tpu.memory_space<vmem>>, vector<1x16x256xbf16>
      %35 = vector.shape_cast %34 : vector<1x16x256xbf16> to vector<16x256xbf16>
      %36 = arith.extf %35 : vector<16x256xbf16> to vector<16x256xf32>
      %37 = arith.addf %33, %36 : vector<16x256xf32>
      %cst_18 = arith.constant 0.000000e+00 : f32
      %38 = vector.broadcast %cst_18 : f32 to vector<16x256xf32>
      %39 = arith.maximumf %37, %38 : vector<16x256xf32>
      %40 = arith.truncf %39 : vector<16x256xf32> to vector<16x256xbf16>
      %c0_19 = arith.constant 0 : index
      %c0_20 = arith.constant 0 : index
      %c0_21 = arith.constant 0 : index
      %41 = vector.load %arg6[%c0_19, %c0_20, %c0_21] : memref<1x16x256xbf16, #tpu.memory_space<vmem>>, vector<1x16x256xbf16>
      %42 = vector.shape_cast %41 : vector<1x16x256xbf16> to vector<16x256xbf16>
      %43 = vector.shape_cast %40 : vector<16x256xbf16> to vector<1x16x256xbf16>
      tpu.vector_store %arg6[%c0_19, %c0_20, %c0_21], %43 {strides = array<i32>} : memref<1x16x256xbf16, #tpu.memory_space<vmem>>, vector<1x16x256xbf16>,
    } else {
    }
    return
  }
  func.func @transform_0(%arg0: i32, %arg1: i32, %arg2: i32) -> (i32, i32, i32) {
    %c0_i32 = arith.constant 0 : i32
    %c0_i32_0 = arith.constant 0 : i32
    return %arg0, %c0_i32, %arg2 : i32, i32, i32
  }
  func.func @transform_1(%arg0: i32, %arg1: i32, %arg2: i32) -> (i32, i32) {
    %c0_i32 = arith.constant 0 : i32
    %c0_i32_0 = arith.constant 0 : i32
    return %arg1, %c0_i32 : i32, i32
  }
  func.func @transform_2(%arg0: i32, %arg1: i32, %arg2: i32) -> (i32, i32, i32) {
    %c0_i32 = arith.constant 0 : i32
    %c0_i32_0 = arith.constant 0 : i32
    return %arg0, %arg1, %c0_i32 : i32, i32, i32
  }
  func.func @transform_3(%arg0: i32, %arg1: i32, %arg2: i32) -> (i32, i32, i32) {
    %c0_i32 = arith.constant 0 : i32
    %c0_i32_0 = arith.constant 0 : i32
    return %arg0, %arg1, %c0_i32 : i32, i32, i32
  }
}

</mosaic_0001>

<llo_original>
// kernel: down_conv_forward.2
$region0: #{down_conv_forward.2}
  #allocation0 [shape = 'u32[]', space=smem, size = 0x4, offset = 0x4, fixed_abs, tag = 'smem constant byte address 0x4 - core index']
  #allocation1 [shape = 'u32[144,128]{1,0:T(1,128)}', space=vmem, size = 0x12000, scoped, tag = 'internal scratch']
  #allocation2 [shape = 'f32[16,256]{1,0:T(8,128)}', space=vmem, size = 0x4000, scoped, tag = 'scratch operand']
  %s0 = inlined_call_operand.vmem [shape: bf16[2,20,256], index: 0, kind: input, shape index: {}]
  %s1 = inlined_call_operand.vmem [shape: bf16[16,20], index: 1, kind: input, shape index: {}]
  %s2 = inlined_call_operand.vmem [shape: bf16[2,16,256], index: 2, kind: output, shape index: {}]
  %s3 = sld [smem:[#allocation0]]
  $region45: #{down_conv_forward.2} parent=0
    _
  %s5 = ssub.s32 1, %s3
  %s6 = scalar_select 0, %s5, %s3
  loop: start=0, step=1, limit=4
  $region2: #{down_conv_forward.2} parent=0 // loop_pre_header
    _
  $region3: #{down_conv_forward.2} parent=0 // loop_header
    %s8 = sphi 0, %s12
    %p9 = scmp.ge.s32.totalorder %s8, 4
    %s15 = sphi 0, %s34
    %s16 = sphi 0, %s30
    %s17 = sphi 0, %s26
    %s18 = sphi 0, %s15
    %s19 = sphi 0, %s16
    %s20 = sphi 0, %s17
    %s21 = sphi 0, %s18
    %s22 = sphi 0, %s19
    %s23 = sphi 0, %s20
    %s39 = sphi 0, %s41
    %s42 = sphi 0, %s39
    %s43 = sphi 0, %s42
    %s59 = sphi 0, %s43
    %s65 = sphi 0, %s67
    %s68 = sphi 0, %s65
    %s69 = sphi 0, %s68
    %s85 = sphi 0, %s69
    %s93 = sphi 0, %s95
    %s96 = sphi 0, %s93
    %s97 = sphi 0, %s96
    %s113 = sphi 0, %s97
  $region4: #{down_conv_forward.2} parent=0 // loop_header_branch
    %11 = sbr.rel (%p9) target = $region8
  $region5: #{down_conv_forward.2} parent=0 // loop_body
    %s13 = ssub.s32 %s8, 1
    %s14 = ssub.s32 %s8, 2
    %s24 = sadd.s32 1, %s17
    %p25 = scmp.ge.s32.totalorder %s24, 1
    %s26 = scalar_select %p25, 0, %s24
    %s27 = sadd.s32 1, %s16
    %s28 = scalar_select %p25, %s27, %s16
    %p29 = scmp.ge.s32.totalorder %s28, 1
    %s30 = scalar_select %p29, 0, %s28
    %s31 = sadd.s32 1, %s15
    %s32 = scalar_select %p29, %s31, %s15
    %p33 = scmp.ge.s32.totalorder %s32, 2
    %s34 = scalar_select %p33, 0, %s32
    %s35 = ssub.s32 %s15, %s34
    %s36 = ssub.s32 %s17, %s26
    %s37 = sor.u32 %s35, %s36
    %p38 = scmp.eq.s32.totalorder %s37, 0
    %s40 = sadd.s32 %s39, 1
    %s41 = scalar_select %p38, %s39, %s40
    %p44 = pneg %p38
    %p45 = scmp.eq.s32.totalorder %s8, 1
    %p46 = por %p44, %p45
    %p47 = scmp.ne.s32.totalorder %s39, %s42
    %p48 = scmp.eq.s32.totalorder %s8, 0
    %p49 = por %p47, %p48
    %p50 = scmp.ne.s32.totalorder %s39, %s42
    %p51 = scmp.eq.s32.totalorder %s13, 1
    %p52 = por %p50, %p51
    %p53 = scmp.ne.s32.totalorder %s42, %s43
    %p54 = scmp.eq.s32.totalorder %s13, 0
    %p55 = por %p53, %p54
    %p56 = scmp.ne.s32.totalorder %s42, %s43
    %p57 = scmp.eq.s32.totalorder %s14, 1
    %p58 = por %p56, %p57
    %p60 = scmp.ne.s32.totalorder %s43, %s59
    %p61 = scmp.eq.s32.totalorder %s14, 0
    %p62 = por %p60, %p61
    %s63 = ssub.s32 %s16, %s30
    %p64 = scmp.eq.s32.totalorder %s63, 0
    %s66 = sadd.s32 %s65, 1
    %s67 = scalar_select %p64, %s65, %s66
    %p70 = pneg %p64
    %p71 = scmp.eq.s32.totalorder %s8, 1
    %p72 = por %p70, %p71
    %p73 = scmp.ne.s32.totalorder %s65, %s68
    %p74 = scmp.eq.s32.totalorder %s8, 0
    %p75 = por %p73, %p74
    %p76 = scmp.ne.s32.totalorder %s65, %s68
    %p77 = scmp.eq.s32.totalorder %s13, 1
    %p78 = por %p76, %p77
    %p79 = scmp.ne.s32.totalorder %s68, %s69
    %p80 = scmp.eq.s32.totalorder %s13, 0
    %p81 = por %p79, %p80
    %p82 = scmp.ne.s32.totalorder %s68, %s69
    %p83 = scmp.eq.s32.totalorder %s14, 1
    %p84 = por %p82, %p83
    %p86 = scmp.ne.s32.totalorder %s69, %s85
    %p87 = scmp.eq.s32.totalorder %s14, 0
    %p88 = por %p86, %p87
    %s89 = ssub.s32 %s15, %s34
    %s90 = ssub.s32 %s16, %s30
    %s91 = sor.u32 %s89, %s90
    %p92 = scmp.eq.s32.totalorder %s91, 0
    %s94 = sadd.s32 %s93, 1
    %s95 = scalar_select %p92, %s93, %s94
    %p98 = pneg %p92
    %p99 = scmp.eq.s32.totalorder %s8, 1
    %p100 = por %p98, %p99
    %p101 = scmp.ne.s32.totalorder %s93, %s96
    %p102 = scmp.eq.s32.totalorder %s8, 0
    %p103 = por %p101, %p102
    %p104 = scmp.ne.s32.totalorder %s93, %s96
    %p105 = scmp.eq.s32.totalorder %s13, 1
    %p106 = por %p104, %p105
    %p107 = scmp.ne.s32.totalorder %s96, %s97
    %p108 = scmp.eq.s32.totalorder %s13, 0
    %p109 = por %p107, %p108
    %p110 = scmp.ne.s32.totalorder %s96, %s97
    %p111 = scmp.eq.s32.totalorder %s14, 1
    %p112 = por %p110, %p111
    %p114 = scmp.ne.s32.totalorder %s97, %s113
    %p115 = scmp.eq.s32.totalorder %s14, 0
    %p116 = por %p114, %p115
    %p117 = scmp.le.s32.totalorder 1, %s8
    %p118 = scmp.lt.s32.totalorder %s8, 3
    %p119 = pnand %p117, %p118
    %p120 = pneg %p119
    // Predicated region
    $region9: #{down_conv_forward.2} parent=5 // pred_check
      _
    $region10: #{down_conv_forward.2} parent=5 // pred_check_branch
      %122 = sbr.rel (%p119) target = $region12
    $region11: #{down_conv_forward.2} parent=5 // pred_region
      %s123 = ssub.s32 %s8, 1
      // Predicated region
      $region13: #{down_conv_forward.2} parent=11 // pred_check
        %p124 = pneg %p81
      $region14: #{down_conv_forward.2} parent=11 // pred_check_branch
        %126 = sbr.rel (%p124) target = $region16
      $region15: #{down_conv_forward.2} parent=11 // pred_region
        %s127 = smul.u32 2, %s19
        %p128 = scmp.lt.s32.totalorder %s127, 1
        %s129 = scalar_select %p128, %s127, 1
        %s130 = smul.addr %s129, 4
        %s131 = scalar_lea.vmem %s1, %s130
        %s132 = smul.u32 2, %s19
      $region16: #{down_conv_forward.2} parent=11 // pred_fallthru
        _
    $region12: #{down_conv_forward.2} parent=5 // pred_fallthru
      _
    %p133 = scmp.lt.s32.totalorder %s8, 2
    // Predicated region
    $region17: #{down_conv_forward.2} parent=5 // pred_check
      %p134 = pneg %p133
    $region18: #{down_conv_forward.2} parent=5 // pred_check_branch
      %136 = sbr.rel (%p134) target = $region20
    $region19: #{down_conv_forward.2} parent=5 // pred_region
      // Predicated region
      $region21: #{down_conv_forward.2} parent=19 // pred_check
        %p137 = pneg %p49
      $region22: #{down_conv_forward.2} parent=19 // pred_check_branch
        %139 = sbr.rel (%p137) target = $region24
      $region23: #{down_conv_forward.2} parent=19 // pred_region
        %s140 = smul.u32 2, %s17
        %p141 = scmp.lt.s32.totalorder %s15, 1
        %s142 = scalar_select %p141, %s15, 1
        %p143 = scmp.lt.s32.totalorder %s140, 1
        %s144 = scalar_select %p143, %s140, 1
        %s145 = smul.addr %s142, 6
        %s146 = sadd.s32 %s144, %s145
        %s147 = smul.addr %s146, 4
        %s148 = scalar_lea.vmem %s0, %s147
        %s149 = smul.u32 2, %s17
      $region24: #{down_conv_forward.2} parent=19 // pred_fallthru
        _
    $region20: #{down_conv_forward.2} parent=5 // pred_fallthru
      _
    %p150 = scmp.le.s32.totalorder 1, %s8
    %p151 = scmp.lt.s32.totalorder %s8, 3
    %p152 = pnand %p150, %p151
    %p153 = pneg %p152
    // Predicated region
    $region25: #{down_conv_forward.2} parent=5 // pred_check
      _
    $region26: #{down_conv_forward.2} parent=5 // pred_check_branch
      %155 = sbr.rel (%p152) target = $region28
    $region27: #{down_conv_forward.2} parent=5 // pred_region
      %s156 = ssub.s32 %s8, 1
      %s157 = smul.u32 2, %s20
      %p158 = scmp.lt.s32.totalorder %s18, 1
      %s159 = scalar_select %p158, %s18, 1
      %p160 = scmp.lt.s32.totalorder %s157, 1
      %s161 = scalar_select %p160, %s157, 1
      %s162 = smul.addr %s159, 6
      %s163 = sadd.s32 %s161, %s162
      %s164 = smul.addr %s163, 4
      %s165 = scalar_lea.vmem %s0, %s164
      %p166 = pneg %p55
      %p167 = pneg %p52
      %s168 = smul.u32 2, %s19
      %p169 = scmp.lt.s32.totalorder %s168, 1
      %s170 = scalar_select %p169, %s168, 1
      %s171 = smul.addr %s170, 4
      %s172 = scalar_lea.vmem %s1, %s171
      %p173 = pneg %p81
      %p174 = pneg %p78
      %p175 = pneg %p109
      %p176 = pneg %p106
      %s177 = smul.u32 2, %s19
      %p178 = scmp.lt.s32.totalorder %s18, 1
      %s179 = scalar_select %p178, %s18, 1
      %p180 = scmp.lt.s32.totalorder %s177, 1
      %s181 = scalar_select %p180, %s177, 1
      %s182 = smul.addr %s181, 2
      %s183 = smul.addr %s179, 4
      %s184 = sadd.s32 %s182, %s183
      %s185 = smul.addr %s184, 4
      %s186 = scalar_lea.vmem %s2, %s185
      %s187 = smul.u32 2, %s20
      %p188 = scmp.lt.s32.totalorder %s18, 1
      %s189 = scalar_select %p188, %s18, 1
      %p190 = scmp.lt.s32.totalorder %s187, 1
      %s191 = scalar_select %p190, %s187, 1
      %s192 = smul.addr %s189, 6
      %s193 = sadd.s32 %s191, %s192
      %s194 = smul.addr %s193, 4
      %s195 = scalar_lea.vmem %s0, %s194
      %s196 = smul.u32 2, %s20
      %s197 = smul.u32 2, %s19
      %p198 = scmp.lt.s32.totalorder %s197, 1
      %s199 = scalar_select %p198, %s197, 1
      %s200 = smul.addr %s199, 4
      %s201 = scalar_lea.vmem %s1, %s200
      %s202 = smul.u32 2, %s19
      %s203 = smul.u32 2, %s19
      %p204 = scmp.lt.s32.totalorder %s18, 1
      %s205 = scalar_select %p204, %s18, 1
      %p206 = scmp.lt.s32.totalorder %s203, 1
      %s207 = scalar_select %p206, %s203, 1
      %s208 = smul.addr %s207, 2
      %s209 = smul.addr %s205, 4
      %s210 = sadd.s32 %s208, %s209
      %s211 = smul.addr %s210, 4
      %s212 = scalar_lea.vmem %s2, %s211
      %s213 = smul.u32 2, %s19
      %v215 = vld [vmem:[%s201] sm:$0xf]
      %v216 = vld [vmem:[%s201 + $0x4] sm:$0xf]
      %v217 = vld [vmem:[%s195] sm:$0xff]
      %v218 = vld [vmem:[%s195 + $0x8] sm:$0xff]
      %v219 = vld [vmem:[%s195 + $0x10] sm:$0x33]
      %v222 = vunpack.c.l.b16 %v215
      %v223 = vunpack.c.l.b16 %v216
      %v224 = vpack.c.b16 %v223, %v222
      %v228 = vunpack.c.l.b16 %v217
      %v229 = vunpack.c.h.b16 %v217
      %v230 = vunpack.c.l.b16 %v218
      %v231 = vunpack.c.h.b16 %v218
      %v232 = vunpack.c.l.b16 %v219
      %v233 = vunpack.c.h.b16 %v219
      %v234 = vpack.c.b16 %v230, %v228
      %v235 = vpack.c.b16 %v231, %v229
      %v236 = vpack.c.b16 %v232, %v232
      %v237 = vpack.c.b16 %v233, %v233
      %vm240 = vcmask 162816
      %v242 = vsel %vm240, %v224, 0
      %vm244 = vcmask 1041408
      %v246 = vsel %vm244, %v236, 0
      %v249 = vsel %vm244, %v237, 0
      %251 = vmatprep.subr.bf16.mxu0 0
      %252 = vmatpush1.bf16.msra.mxu0 0
      %253 = vmatprep.subr.bf16.mxu0 0
      %254 = vmatpush1.bf16.msra.mxu0 0
      %255 = vmatprep.subr.bf16.mxu0 0
      %256 = vmatpush1.bf16.msra.mxu0 0
      %257 = vmatprep.subr.bf16.mxu0 0
      %258 = vmatpush1.bf16.msra.mxu0 0
      %259 = vmatprep.subr.bf16.mxu0 0
      %260 = vmatpush1.bf16.msra.mxu0 0
      %261 = vmatprep.subr.bf16.mxu0 0
      %262 = vmatpush1.bf16.msra.mxu0 0
      %263 = vmatprep.subr.bf16.mxu0 %v249
      %264 = vmatpush1.bf16.msra.mxu0 %v246
      %265 = vmatprep.subr.bf16.mxu0 %v235
      %266 = vmatpush1.bf16.msra.mxu0 %v234
      %267 = vmatprep.subr.bf16.mxu0 0
      %268 = vmatpush2.bf16.msra.mxu0 0
      %269 = vmatprep.subr.bf16.mxu0 0
      %270 = vmatpush2.bf16.msra.mxu0 0
      %271 = vmatprep.subr.bf16.mxu0 0
      %272 = vmatpush2.bf16.msra.mxu0 0
      %273 = vmatprep.subr.bf16.mxu0 0
      %274 = vmatpush2.bf16.msra.mxu0 0
      %275 = vmatprep.subr.bf16.mxu0 0
      %276 = vmatpush2.bf16.msra.mxu0 0
      %277 = vmatprep.subr.bf16.mxu0 0
      %278 = vmatpush2.bf16.msra.mxu0 0
      %279 = vmatprep.subr.bf16.mxu0 0
      %280 = vmatpush2.bf16.msra.mxu0 0
      %281 = vmatprep.subr.bf16.mxu0 0
      %282 = vmatpush2.bf16.msra.mxu0 0
      %283 = vmatprep.mubr.bf16.mxu0 0
      %284 = vmatmul.mubr.bf16.gmra.mxu0 %v242
      %v285 = vpop.f32.mrf.mxu0
      %v286 = vadd.f32 0.0, %v285
      %v287 = vpop.f32.mrf.mxu0
      %v288 = vadd.f32 0.0, %v287
      %v289 = vpop.f32.mrf.mxu0
      %v290 = vadd.f32 0.0, %v289
      %v291 = vpop.f32.mrf.mxu0
      %v292 = vadd.f32 0.0, %v291
      %293 = vdwg.mxu0
      %s294 = smul.u32 %s20, 256
      %s295 = sshra.s32 %s294, 7
      %s296 = sand.u32 %s294, 127
      %s297 = smul.addr %s295, 8
      %s298 = scalar_lea.vmem [#allocation2], %s297
      %299 = vst [vmem:[%s298] sm:$0xff] %v286
      %300 = vst [vmem:[%s298 + $0x8] sm:$0xff] %v288
      %301 = vst [vmem:[%s298 + $0x10] sm:$0xff] %v290
      %302 = vst [vmem:[%s298 + $0x18] sm:$0xff] %v292
      %p303 = scmp.eq.s32.totalorder %s20, 0
      // Predicated region
      $region29: #{down_conv_forward.2} parent=27 // pred_check
        %p304 = pneg %p303
      $region30: #{down_conv_forward.2} parent=27 // pred_check_branch
        %306 = sbr.rel (%p304) target = $region32
      $region31: #{down_conv_forward.2} parent=27 // pred_region
        %v307 = vld [vmem:[#allocation2] sm:$0xff]
        %v308 = vld [vmem:[#allocation2 + $0x8] sm:$0xff]
        %v309 = vld [vmem:[#allocation2 + $0x10] sm:$0xff]
        %v310 = vld [vmem:[#allocation2 + $0x18] sm:$0xff]
        %v311 = vadd.f32 %v307, %v308
        %312 = vadd.xlane.f32.xlu0 %v311
        %v313 = vpop.xlane.xlu0 %312
        %v314 = vadd.f32 %v309, %v310
        %315 = vadd.xlane.f32.xlu0 %v314
        %v316 = vpop.xlane.xlu0 %315
        %v317 = vmul.f32 %v313, 0.005
        %v318 = vmul.f32 %v316, 0.005
        %v319 = vsub.f32 %v307, %v317
        %v320 = vsub.f32 %v308, %v317
        %v321 = vsub.f32 %v309, %v318
        %v322 = vsub.f32 %v310, %v318
        %v323 = vmul.f32 %v319, %v319
        %v324 = vmul.f32 %v320, %v320
        %v325 = vmul.f32 %v321, %v321
        %v326 = vmul.f32 %v322, %v322
        %v327 = vadd.f32 %v323, %v324
        %328 = vadd.xlane.f32.xlu0 %v327
        %v329 = vpop.xlane.xlu0 %328
        %v330 = vadd.f32 %v325, %v326
        %331 = vadd.xlane.f32.xlu0 %v330
        %v332 = vpop.xlane.xlu0 %331
        %v333 = vmul.f32 %v317, %v317
        %v334 = vmul.f32 %v318, %v318
        %v335 = vmul.f32 %v333, 56.0
        %v336 = vmul.f32 %v334, 56.0
        %v337 = vsub.f32 %v329, %v335
        %v338 = vsub.f32 %v332, %v336
        %v339 = vmul.f32 %v337, 0.005
        %v340 = vmul.f32 %v338, 0.005
        %v341 = vmax.f32 %v339, 0.0
        %v342 = vmax.f32 %v340, 0.0
        %v343 = vadd.f32 %v341, 1e-05
        %v344 = vadd.f32 %v342, 1e-05
        %v345 = vrsqrt.pop %v343
        %v346 = vrsqrt.pop %v344
        %v347 = vmul.f32 %v319, %v345
        %v348 = vmul.f32 %v320, %v345
        %v349 = vmul.f32 %v321, %v346
        %v350 = vmul.f32 %v322, %v346
        %v351 = vmax.f32 %v347, 0.0
        %v352 = vmax.f32 %v348, 0.0
        %v353 = vmax.f32 %v349, 0.0
        %v354 = vmax.f32 %v350, 0.0
        %v355 = vpack.c.bf16 %v353, %v351
        %v356 = vpack.c.bf16 %v354, %v352
        %v359 = vunpack.c.l.b16 %v355
        %v360 = vunpack.c.l.b16 %v356
        %v361 = vunpack.c.h.b16 %v355
        %v362 = vunpack.c.h.b16 %v356
        %v363 = vpack.c.b16 %v360, %v359
        %v364 = vpack.c.b16 %v362, %v361
        %367 = vst [vmem:[%s212] sm:$0xff] %v363
        %368 = vst [vmem:[%s212 + $0x8] sm:$0xff] %v364
      $region32: #{down_conv_forward.2} parent=27 // pred_fallthru
        _
      %s369 = smul.u32 2, %s19
      %p370 = scmp.lt.s32.totalorder %s18, 1
      %s371 = scalar_select %p370, %s18, 1
      %p372 = scmp.lt.s32.totalorder %s369, 1
      %s373 = scalar_select %p372, %s369, 1
      %s374 = smul.addr %s373, 2
      %s375 = smul.addr %s371, 4
      %s376 = sadd.s32 %s374, %s375
      %s377 = smul.addr %s376, 4
      %s378 = scalar_lea.vmem %s2, %s377
      // Predicated region
      $region33: #{down_conv_forward.2} parent=27 // pred_check
        %p379 = pneg %p106
      $region34: #{down_conv_forward.2} parent=27 // pred_check_branch
        %381 = sbr.rel (%p379) target = $region36
      $region35: #{down_conv_forward.2} parent=27 // pred_region
        %s382 = smul.u32 2, %s19
      $region36: #{down_conv_forward.2} parent=27 // pred_fallthru
        _
    $region28: #{down_conv_forward.2} parent=5 // pred_fallthru
      _
    %p383 = scmp.le.s32.totalorder 2, %s8
    // Predicated region
    $region37: #{down_conv_forward.2} parent=5 // pred_check
      %p384 = pneg %p383
    $region38: #{down_conv_forward.2} parent=5 // pred_check_branch
      %386 = sbr.rel (%p384) target = $region40
    $region39: #{down_conv_forward.2} parent=5 // pred_region
      %s387 = ssub.s32 %s8, 2
      // Predicated region
      $region41: #{down_conv_forward.2} parent=39 // pred_check
        %p388 = pneg %p112
      $region42: #{down_conv_forward.2} parent=39 // pred_check_branch
        %390 = sbr.rel (%p388) target = $region44
      $region43: #{down_conv_forward.2} parent=39 // pred_region
        %s391 = smul.u32 2, %s22
        %p392 = scmp.lt.s32.totalorder %s21, 1
        %s393 = scalar_select %p392, %s21, 1
        %p394 = scmp.lt.s32.totalorder %s391, 1
        %s395 = scalar_select %p394, %s391, 1
        %s396 = smul.addr %s395, 2
        %s397 = smul.addr %s393, 4
        %s398 = sadd.s32 %s396, %s397
        %s399 = smul.addr %s398, 4
        %s400 = scalar_lea.vmem %s2, %s399
      $region44: #{down_conv_forward.2} parent=39 // pred_fallthru
        _
    $region40: #{down_conv_forward.2} parent=5 // pred_fallthru
      _
  $region6: #{down_conv_forward.2} parent=0 // loop_footer
    %s12 = sadd.s32 1, %s8
  $region7: #{down_conv_forward.2} parent=0 // loop_footer_branch
    %7 = sbr.rel target = $region3
  $region8: #{down_conv_forward.2} parent=0 // loop_exit
    _

// kernel: down_conv_forward.3
$region0: #{down_conv_forward.3}
  #allocation0 [shape = 'u32[]', space=smem, size = 0x4, offset = 0x4, fixed_abs, tag = 'smem constant byte address 0x4 - core index']
  #allocation1 [shape = 'u32[144,128]{1,0:T(1,128)}', space=vmem, size = 0x12000, scoped, tag = 'internal scratch']
  #allocation2 [shape = 'f32[16,256]{1,0:T(8,128)}', space=vmem, size = 0x4000, scoped, tag = 'scratch operand']
  %s0 = inlined_call_operand.vmem [shape: bf16[2,80,256], index: 0, kind: input, shape index: {}]
  %s1 = inlined_call_operand.vmem [shape: bf16[16,80], index: 1, kind: input, shape index: {}]
  %s2 = inlined_call_operand.vmem [shape: bf16[2,16,256], index: 2, kind: input, shape index: {}]
  %s3 = inlined_call_operand.vmem [shape: bf16[2,16,256], index: 3, kind: output, shape index: {}]
  %s4 = sld [smem:[#allocation0]]
  $region49: #{down_conv_forward.3} parent=0
    _
  %s6 = ssub.s32 1, %s4
  %s7 = scalar_select 0, %s6, %s4
  loop: start=0, step=1, limit=4
  $region2: #{down_conv_forward.3} parent=0 // loop_pre_header
    _
  $region3: #{down_conv_forward.3} parent=0 // loop_header
    %s9 = sphi 0, %s13
    %p10 = scmp.ge.s32.totalorder %s9, 4
    %s16 = sphi 0, %s35
    %s17 = sphi 0, %s31
    %s18 = sphi 0, %s27
    %s19 = sphi 0, %s16
    %s20 = sphi 0, %s17
    %s21 = sphi 0, %s18
    %s22 = sphi 0, %s19
    %s23 = sphi 0, %s20
    %s24 = sphi 0, %s21
    %s40 = sphi 0, %s42
    %s43 = sphi 0, %s40
    %s44 = sphi 0, %s43
    %s60 = sphi 0, %s44
    %s66 = sphi 0, %s68
    %s69 = sphi 0, %s66
    %s70 = sphi 0, %s69
    %s86 = sphi 0, %s70
    %s94 = sphi 0, %s96
    %s97 = sphi 0, %s94
    %s98 = sphi 0, %s97
    %s114 = sphi 0, %s98
    %s122 = sphi 0, %s124
    %s125 = sphi 0, %s122
    %s126 = sphi 0, %s125
    %s142 = sphi 0, %s126
  $region4: #{down_conv_forward.3} parent=0 // loop_header_branch
    %12 = sbr.rel (%p10) target = $region8
  $region5: #{down_conv_forward.3} parent=0 // loop_body
    %s14 = ssub.s32 %s9, 1
    %s15 = ssub.s32 %s9, 2
    %s25 = sadd.s32 1, %s18
    %p26 = scmp.ge.s32.totalorder %s25, 1
    %s27 = scalar_select %p26, 0, %s25
    %s28 = sadd.s32 1, %s17
    %s29 = scalar_select %p26, %s28, %s17
    %p30 = scmp.ge.s32.totalorder %s29, 1
    %s31 = scalar_select %p30, 0, %s29
    %s32 = sadd.s32 1, %s16
    %s33 = scalar_select %p30, %s32, %s16
    %p34 = scmp.ge.s32.totalorder %s33, 2
    %s35 = scalar_select %p34, 0, %s33
    %s36 = ssub.s32 %s16, %s35
    %s37 = ssub.s32 %s18, %s27
    %s38 = sor.u32 %s36, %s37
    %p39 = scmp.eq.s32.totalorder %s38, 0
    %s41 = sadd.s32 %s40, 1
    %s42 = scalar_select %p39, %s40, %s41
    %p45 = pneg %p39
    %p46 = scmp.eq.s32.totalorder %s9, 1
    %p47 = por %p45, %p46
    %p48 = scmp.ne.s32.totalorder %s40, %s43
    %p49 = scmp.eq.s32.totalorder %s9, 0
    %p50 = por %p48, %p49
    %p51 = scmp.ne.s32.totalorder %s40, %s43
    %p52 = scmp.eq.s32.totalorder %s14, 1
    %p53 = por %p51, %p52
    %p54 = scmp.ne.s32.totalorder %s43, %s44
    %p55 = scmp.eq.s32.totalorder %s14, 0
    %p56 = por %p54, %p55
    %p57 = scmp.ne.s32.totalorder %s43, %s44
    %p58 = scmp.eq.s32.totalorder %s15, 1
    %p59 = por %p57, %p58
    %p61 = scmp.ne.s32.totalorder %s44, %s60
    %p62 = scmp.eq.s32.totalorder %s15, 0
    %p63 = por %p61, %p62
    %s64 = ssub.s32 %s17, %s31
    %p65 = scmp.eq.s32.totalorder %s64, 0
    %s67 = sadd.s32 %s66, 1
    %s68 = scalar_select %p65, %s66, %s67
    %p71 = pneg %p65
    %p72 = scmp.eq.s32.totalorder %s9, 1
    %p73 = por %p71, %p72
    %p74 = scmp.ne.s32.totalorder %s66, %s69
    %p75 = scmp.eq.s32.totalorder %s9, 0
    %p76 = por %p74, %p75
    %p77 = scmp.ne.s32.totalorder %s66, %s69
    %p78 = scmp.eq.s32.totalorder %s14, 1
    %p79 = por %p77, %p78
    %p80 = scmp.ne.s32.totalorder %s69, %s70
    %p81 = scmp.eq.s32.totalorder %s14, 0
    %p82 = por %p80, %p81
    %p83 = scmp.ne.s32.totalorder %s69, %s70
    %p84 = scmp.eq.s32.totalorder %s15, 1
    %p85 = por %p83, %p84
    %p87 = scmp.ne.s32.totalorder %s70, %s86
    %p88 = scmp.eq.s32.totalorder %s15, 0
    %p89 = por %p87, %p88
    %s90 = ssub.s32 %s16, %s35
    %s91 = ssub.s32 %s17, %s31
    %s92 = sor.u32 %s90, %s91
    %p93 = scmp.eq.s32.totalorder %s92, 0
    %s95 = sadd.s32 %s94, 1
    %s96 = scalar_select %p93, %s94, %s95
    %p99 = pneg %p93
    %p100 = scmp.eq.s32.totalorder %s9, 1
    %p101 = por %p99, %p100
    %p102 = scmp.ne.s32.totalorder %s94, %s97
    %p103 = scmp.eq.s32.totalorder %s9, 0
    %p104 = por %p102, %p103
    %p105 = scmp.ne.s32.totalorder %s94, %s97
    %p106 = scmp.eq.s32.totalorder %s14, 1
    %p107 = por %p105, %p106
    %p108 = scmp.ne.s32.totalorder %s97, %s98
    %p109 = scmp.eq.s32.totalorder %s14, 0
    %p110 = por %p108, %p109
    %p111 = scmp.ne.s32.totalorder %s97, %s98
    %p112 = scmp.eq.s32.totalorder %s15, 1
    %p113 = por %p111, %p112
    %p115 = scmp.ne.s32.totalorder %s98, %s114
    %p116 = scmp.eq.s32.totalorder %s15, 0
    %p117 = por %p115, %p116
    %s118 = ssub.s32 %s16, %s35
    %s119 = ssub.s32 %s17, %s31
    %s120 = sor.u32 %s118, %s119
    %p121 = scmp.eq.s32.totalorder %s120, 0
    %s123 = sadd.s32 %s122, 1
    %s124 = scalar_select %p121, %s122, %s123
    %p127 = pneg %p121
    %p128 = scmp.eq.s32.totalorder %s9, 1
    %p129 = por %p127, %p128
    %p130 = scmp.ne.s32.totalorder %s122, %s125
    %p131 = scmp.eq.s32.totalorder %s9, 0
    %p132 = por %p130, %p131
    %p133 = scmp.ne.s32.totalorder %s122, %s125
    %p134 = scmp.eq.s32.totalorder %s14, 1
    %p135 = por %p133, %p134
    %p136 = scmp.ne.s32.totalorder %s125, %s126
    %p137 = scmp.eq.s32.totalorder %s14, 0
    %p138 = por %p136, %p137
    %p139 = scmp.ne.s32.totalorder %s125, %s126
    %p140 = scmp.eq.s32.totalorder %s15, 1
    %p141 = por %p139, %p140
    %p143 = scmp.ne.s32.totalorder %s126, %s142
    %p144 = scmp.eq.s32.totalorder %s15, 0
    %p145 = por %p143, %p144
    %p146 = scmp.le.s32.totalorder 1, %s9
    %p147 = scmp.lt.s32.totalorder %s9, 3
    %p148 = pnand %p146, %p147
    %p149 = pneg %p148
    // Predicated region
    $region9: #{down_conv_forward.3} parent=5 // pred_check
      _
    $region10: #{down_conv_forward.3} parent=5 // pred_check_branch
      %151 = sbr.rel (%p148) target = $region12
    $region11: #{down_conv_forward.3} parent=5 // pred_region
      %s152 = ssub.s32 %s9, 1
      // Predicated region
      $region13: #{down_conv_forward.3} parent=11 // pred_check
        %p153 = pneg %p82
      $region14: #{down_conv_forward.3} parent=11 // pred_check_branch
        %155 = sbr.rel (%p153) target = $region16
      $region15: #{down_conv_forward.3} parent=11 // pred_region
        %s156 = smul.u32 2, %s20
        %p157 = scmp.lt.s32.totalorder %s156, 1
        %s158 = scalar_select %p157, %s156, 1
        %s159 = smul.addr %s158, 4
        %s160 = scalar_lea.vmem %s1, %s159
        %s161 = smul.u32 2, %s20
      $region16: #{down_conv_forward.3} parent=11 // pred_fallthru
        _
    $region12: #{down_conv_forward.3} parent=5 // pred_fallthru
      _
    %p162 = scmp.lt.s32.totalorder %s9, 2
    // Predicated region
    $region17: #{down_conv_forward.3} parent=5 // pred_check
      %p163 = pneg %p162
    $region18: #{down_conv_forward.3} parent=5 // pred_check_branch
      %165 = sbr.rel (%p163) target = $region20
    $region19: #{down_conv_forward.3} parent=5 // pred_region
      // Predicated region
      $region21: #{down_conv_forward.3} parent=19 // pred_check
        %p166 = pneg %p50
      $region22: #{down_conv_forward.3} parent=19 // pred_check_branch
        %168 = sbr.rel (%p166) target = $region24
      $region23: #{down_conv_forward.3} parent=19 // pred_region
        %s169 = smul.u32 2, %s18
        %p170 = scmp.lt.s32.totalorder %s16, 1
        %s171 = scalar_select %p170, %s16, 1
        %p172 = scmp.lt.s32.totalorder %s169, 1
        %s173 = scalar_select %p172, %s169, 1
        %s174 = smul.addr %s171, 20
        %s175 = sadd.s32 %s173, %s174
        %s176 = smul.addr %s175, 4
        %s177 = scalar_lea.vmem %s0, %s176
        %s178 = smul.u32 2, %s18
      $region24: #{down_conv_forward.3} parent=19 // pred_fallthru
        _
      // Predicated region
      $region25: #{down_conv_forward.3} parent=19 // pred_check
        %p179 = pneg %p104
      $region26: #{down_conv_forward.3} parent=19 // pred_check_branch
        %181 = sbr.rel (%p179) target = $region28
      $region27: #{down_conv_forward.3} parent=19 // pred_region
        %s182 = smul.u32 2, %s17
        %p183 = scmp.lt.s32.totalorder %s16, 1
        %s184 = scalar_select %p183, %s16, 1
        %p185 = scmp.lt.s32.totalorder %s182, 1
        %s186 = scalar_select %p185, %s182, 1
        %s187 = smul.addr %s186, 2
        %s188 = smul.addr %s184, 4
        %s189 = sadd.s32 %s187, %s188
        %s190 = smul.addr %s189, 4
        %s191 = scalar_lea.vmem %s2, %s190
        %s192 = smul.u32 2, %s17
      $region28: #{down_conv_forward.3} parent=19 // pred_fallthru
        _
    $region20: #{down_conv_forward.3} parent=5 // pred_fallthru
      _
    %p193 = scmp.le.s32.totalorder 1, %s9
    %p194 = scmp.lt.s32.totalorder %s9, 3
    %p195 = pnand %p193, %p194
    %p196 = pneg %p195
    // Predicated region
    $region29: #{down_conv_forward.3} parent=5 // pred_check
      _
    $region30: #{down_conv_forward.3} parent=5 // pred_check_branch
      %198 = sbr.rel (%p195) target = $region32
    $region31: #{down_conv_forward.3} parent=5 // pred_region
      %s199 = ssub.s32 %s9, 1
      %s200 = smul.u32 2, %s21
      %p201 = scmp.lt.s32.totalorder %s19, 1
      %s202 = scalar_select %p201, %s19, 1
      %p203 = scmp.lt.s32.totalorder %s200, 1
      %s204 = scalar_select %p203, %s200, 1
      %s205 = smul.addr %s202, 20
      %s206 = sadd.s32 %s204, %s205
      %s207 = smul.addr %s206, 4
      %s208 = scalar_lea.vmem %s0, %s207
      %p209 = pneg %p56
      %p210 = pneg %p53
      %s211 = smul.u32 2, %s20
      %p212 = scmp.lt.s32.totalorder %s211, 1
      %s213 = scalar_select %p212, %s211, 1
      %s214 = smul.addr %s213, 4
      %s215 = scalar_lea.vmem %s1, %s214
      %p216 = pneg %p82
      %p217 = pneg %p79
      %s218 = smul.u32 2, %s20
      %p219 = scmp.lt.s32.totalorder %s19, 1
      %s220 = scalar_select %p219, %s19, 1
      %p221 = scmp.lt.s32.totalorder %s218, 1
      %s222 = scalar_select %p221, %s218, 1
      %s223 = smul.addr %s222, 2
      %s224 = smul.addr %s220, 4
      %s225 = sadd.s32 %s223, %s224
      %s226 = smul.addr %s225, 4
      %s227 = scalar_lea.vmem %s2, %s226
      %p228 = pneg %p110
      %p229 = pneg %p107
      %p230 = pneg %p138
      %p231 = pneg %p135
      %s232 = smul.u32 2, %s20
      %p233 = scmp.lt.s32.totalorder %s19, 1
      %s234 = scalar_select %p233, %s19, 1
      %p235 = scmp.lt.s32.totalorder %s232, 1
      %s236 = scalar_select %p235, %s232, 1
      %s237 = smul.addr %s236, 2
      %s238 = smul.addr %s234, 4
      %s239 = sadd.s32 %s237, %s238
      %s240 = smul.addr %s239, 4
      %s241 = scalar_lea.vmem %s3, %s240
      %s242 = smul.u32 2, %s21
      %p243 = scmp.lt.s32.totalorder %s19, 1
      %s244 = scalar_select %p243, %s19, 1
      %p245 = scmp.lt.s32.totalorder %s242, 1
      %s246 = scalar_select %p245, %s242, 1
      %s247 = smul.addr %s244, 20
      %s248 = sadd.s32 %s246, %s247
      %s249 = smul.addr %s248, 4
      %s250 = scalar_lea.vmem %s0, %s249
      %s251 = smul.u32 2, %s21
      %s252 = smul.u32 2, %s20
      %p253 = scmp.lt.s32.totalorder %s252, 1
      %s254 = scalar_select %p253, %s252, 1
      %s255 = smul.addr %s254, 4
      %s256 = scalar_lea.vmem %s1, %s255
      %s257 = smul.u32 2, %s20
      %s258 = smul.u32 2, %s20
      %p259 = scmp.lt.s32.totalorder %s19, 1
      %s260 = scalar_select %p259, %s19, 1
      %p261 = scmp.lt.s32.totalorder %s258, 1
      %s262 = scalar_select %p261, %s258, 1
      %s263 = smul.addr %s262, 2
      %s264 = smul.addr %s260, 4
      %s265 = sadd.s32 %s263, %s264
      %s266 = smul.addr %s265, 4
      %s267 = scalar_lea.vmem %s2, %s266
      %s268 = smul.u32 2, %s20
      %s269 = smul.u32 2, %s20
      %p270 = scmp.lt.s32.totalorder %s19, 1
      %s271 = scalar_select %p270, %s19, 1
      %p272 = scmp.lt.s32.totalorder %s269, 1
      %s273 = scalar_select %p272, %s269, 1
      %s274 = smul.addr %s273, 2
      %s275 = smul.addr %s271, 4
      %s276 = sadd.s32 %s274, %s275
      %s277 = smul.addr %s276, 4
      %s278 = scalar_lea.vmem %s3, %s277
      %s279 = smul.u32 2, %s20
      %v281 = vld [vmem:[%s256] sm:$0xf]
      %v282 = vld [vmem:[%s256 + $0x4] sm:$0xf]
      %v283 = vld [vmem:[%s250] sm:$0xff]
      %v284 = vld [vmem:[%s250 + $0x8] sm:$0xff]
      %v285 = vld [vmem:[%s250 + $0x10] sm:$0xff]
      %v286 = vld [vmem:[%s250 + $0x18] sm:$0xff]
      %v287 = vld [vmem:[%s250 + $0x20] sm:$0xff]
      %v288 = vld [vmem:[%s250 + $0x28] sm:$0xff]
      %v289 = vld [vmem:[%s250 + $0x30] sm:$0xff]
      %v290 = vld [vmem:[%s250 + $0x38] sm:$0xff]
      %v291 = vld [vmem:[%s250 + $0x40] sm:$0xff]
      %v292 = vld [vmem:[%s250 + $0x48] sm:$0xff]
      %v295 = vunpack.c.l.b16 %v281
      %v296 = vunpack.c.l.b16 %v282
      %v297 = vpack.c.b16 %v296, %v295
      %v308 = vunpack.c.l.b16 %v283
      %v309 = vunpack.c.h.b16 %v283
      %v310 = vunpack.c.l.b16 %v284
      %v311 = vunpack.c.h.b16 %v284
      %v312 = vunpack.c.l.b16 %v285
      %v313 = vunpack.c.h.b16 %v285
      %v314 = vunpack.c.l.b16 %v286
      %v315 = vunpack.c.h.b16 %v286
      %v316 = vunpack.c.l.b16 %v287
      %v317 = vunpack.c.h.b16 %v287
      %v318 = vunpack.c.l.b16 %v288
      %v319 = vunpack.c.h.b16 %v288
      %v320 = vunpack.c.l.b16 %v289
      %v321 = vunpack.c.h.b16 %v289
      %v322 = vunpack.c.l.b16 %v290
      %v323 = vunpack.c.h.b16 %v290
      %v324 = vunpack.c.l.b16 %v291
      %v325 = vunpack.c.h.b16 %v291
      %v326 = vunpack.c.l.b16 %v292
      %v327 = vunpack.c.h.b16 %v292
      %v328 = vpack.c.b16 %v310, %v308
      %v329 = vpack.c.b16 %v311, %v309
      %v330 = vpack.c.b16 %v314, %v312
      %v331 = vpack.c.b16 %v315, %v313
      %v332 = vpack.c.b16 %v318, %v316
      %v333 = vpack.c.b16 %v319, %v317
      %v334 = vpack.c.b16 %v322, %v320
      %v335 = vpack.c.b16 %v323, %v321
      %v336 = vpack.c.b16 %v326, %v324
      %v337 = vpack.c.b16 %v327, %v325
      %vm348 = vcmask 654336
      %v350 = vsel %vm348, %v297, 0
      %352 = vmatprep.subr.bf16.mxu0 0
      %353 = vmatpush1.bf16.msra.mxu0 0
      %354 = vmatprep.subr.bf16.mxu0 0
      %355 = vmatpush1.bf16.msra.mxu0 0
      %356 = vmatprep.subr.bf16.mxu0 0
      %357 = vmatpush1.bf16.msra.mxu0 0
      %358 = vmatprep.subr.bf16.mxu0 %v337
      %359 = vmatpush1.bf16.msra.mxu0 %v336
      %360 = vmatprep.subr.bf16.mxu0 %v335
      %361 = vmatpush1.bf16.msra.mxu0 %v334
      %362 = vmatprep.subr.bf16.mxu0 %v333
      %363 = vmatpush1.bf16.msra.mxu0 %v332
      %364 = vmatprep.subr.bf16.mxu0 %v331
      %365 = vmatpush1.bf16.msra.mxu0 %v330
      %366 = vmatprep.subr.bf16.mxu0 %v329
      %367 = vmatpush1.bf16.msra.mxu0 %v328
      %368 = vmatprep.subr.bf16.mxu0 0
      %369 = vmatpush2.bf16.msra.mxu0 0
      %370 = vmatprep.subr.bf16.mxu0 0
      %371 = vmatpush2.bf16.msra.mxu0 0
      %372 = vmatprep.subr.bf16.mxu0 0
      %373 = vmatpush2.bf16.msra.mxu0 0
      %374 = vmatprep.subr.bf16.mxu0 0
      %375 = vmatpush2.bf16.msra.mxu0 0
      %376 = vmatprep.subr.bf16.mxu0 0
      %377 = vmatpush2.bf16.msra.mxu0 0
      %378 = vmatprep.subr.bf16.mxu0 0
      %379 = vmatpush2.bf16.msra.mxu0 0
      %380 = vmatprep.subr.bf16.mxu0 0
      %381 = vmatpush2.bf16.msra.mxu0 0
      %382 = vmatprep.subr.bf16.mxu0 0
      %383 = vmatpush2.bf16.msra.mxu0 0
      %384 = vmatprep.mubr.bf16.mxu0 0
      %385 = vmatmul.mubr.bf16.gmra.mxu0 %v350
      %v386 = vpop.f32.mrf.mxu0
      %v387 = vadd.f32 0.0, %v386
      %v388 = vpop.f32.mrf.mxu0
      %v389 = vadd.f32 0.0, %v388
      %v390 = vpop.f32.mrf.mxu0
      %v391 = vadd.f32 0.0, %v390
      %v392 = vpop.f32.mrf.mxu0
      %v393 = vadd.f32 0.0, %v392
      %394 = vdwg.mxu0
      %s395 = smul.u32 %s21, 256
      %s396 = sshra.s32 %s395, 7
      %s397 = sand.u32 %s395, 127
      %s398 = smul.addr %s396, 8
      %s399 = scalar_lea.vmem [#allocation2], %s398
      %400 = vst [vmem:[%s399] sm:$0xff] %v387
      %401 = vst [vmem:[%s399 + $0x8] sm:$0xff] %v389
      %402 = vst [vmem:[%s399 + $0x10] sm:$0xff] %v391
      %403 = vst [vmem:[%s399 + $0x18] sm:$0xff] %v393
      %p404 = scmp.eq.s32.totalorder %s21, 0
      // Predicated region
      $region33: #{down_conv_forward.3} parent=31 // pred_check
        %p405 = pneg %p404
      $region34: #{down_conv_forward.3} parent=31 // pred_check_branch
        %407 = sbr.rel (%p405) target = $region36
      $region35: #{down_conv_forward.3} parent=31 // pred_region
        %v408 = vld [vmem:[#allocation2] sm:$0xff]
        %v409 = vld [vmem:[#allocation2 + $0x8] sm:$0xff]
        %v410 = vld [vmem:[#allocation2 + $0x10] sm:$0xff]
        %v411 = vld [vmem:[#allocation2 + $0x18] sm:$0xff]
        %v412 = vadd.f32 %v408, %v409
        %413 = vadd.xlane.f32.xlu0 %v412
        %v414 = vpop.xlane.xlu0 %413
        %v415 = vadd.f32 %v410, %v411
        %416 = vadd.xlane.f32.xlu0 %v415
        %v417 = vpop.xlane.xlu0 %416
        %v418 = vmul.f32 %v414, 0.005
        %v419 = vmul.f32 %v417, 0.005
        %v420 = vsub.f32 %v408, %v418
        %v421 = vsub.f32 %v409, %v418
        %v422 = vsub.f32 %v410, %v419
        %v423 = vsub.f32 %v411, %v419
        %v424 = vmul.f32 %v420, %v420
        %v425 = vmul.f32 %v421, %v421
        %v426 = vmul.f32 %v422, %v422
        %v427 = vmul.f32 %v423, %v423
        %v428 = vadd.f32 %v424, %v425
        %429 = vadd.xlane.f32.xlu0 %v428
        %v430 = vpop.xlane.xlu0 %429
        %v431 = vadd.f32 %v426, %v427
        %432 = vadd.xlane.f32.xlu0 %v431
        %v433 = vpop.xlane.xlu0 %432
        %v434 = vmul.f32 %v418, %v418
        %v435 = vmul.f32 %v419, %v419
        %v436 = vmul.f32 %v434, 56.0
        %v437 = vmul.f32 %v435, 56.0
        %v438 = vsub.f32 %v430, %v436
        %v439 = vsub.f32 %v433, %v437
        %v440 = vmul.f32 %v438, 0.005
        %v441 = vmul.f32 %v439, 0.005
        %v442 = vmax.f32 %v440, 0.0
        %v443 = vmax.f32 %v441, 0.0
        %v444 = vadd.f32 %v442, 1e-05
        %v445 = vadd.f32 %v443, 1e-05
        %v446 = vrsqrt.pop %v444
        %v447 = vrsqrt.pop %v445
        %v448 = vmul.f32 %v420, %v446
        %v449 = vmul.f32 %v421, %v446
        %v450 = vmul.f32 %v422, %v447
        %v451 = vmul.f32 %v423, %v447
        %v452 = vld [vmem:[%s267] sm:$0xff]
        %v453 = vld [vmem:[%s267 + $0x8] sm:$0xff]
        %v454 = vunpack.c.l.bf16 %v452
        %v455 = vunpack.c.h.bf16 %v452
        %v456 = vunpack.c.l.bf16 %v453
        %v457 = vunpack.c.h.bf16 %v453
        %v458 = vadd.f32 %v448, %v454
        %v459 = vadd.f32 %v449, %v455
        %v460 = vadd.f32 %v450, %v456
        %v461 = vadd.f32 %v451, %v457
        %v462 = vmax.f32 %v458, 0.0
        %v463 = vmax.f32 %v459, 0.0
        %v464 = vmax.f32 %v460, 0.0
        %v465 = vmax.f32 %v461, 0.0
        %v466 = vpack.c.bf16 %v464, %v462
        %v467 = vpack.c.bf16 %v465, %v463
        %v470 = vunpack.c.l.b16 %v466
        %v471 = vunpack.c.l.b16 %v467
        %v472 = vunpack.c.h.b16 %v466
        %v473 = vunpack.c.h.b16 %v467
        %v474 = vpack.c.b16 %v471, %v470
        %v475 = vpack.c.b16 %v473, %v472
        %478 = vst [vmem:[%s278] sm:$0xff] %v474
        %479 = vst [vmem:[%s278 + $0x8] sm:$0xff] %v475
      $region36: #{down_conv_forward.3} parent=31 // pred_fallthru
        _
      %s480 = smul.u32 2, %s20
      %p481 = scmp.lt.s32.totalorder %s19, 1
      %s482 = scalar_select %p481, %s19, 1
      %p483 = scmp.lt.s32.totalorder %s480, 1
      %s484 = scalar_select %p483, %s480, 1
      %s485 = smul.addr %s484, 2
      %s486 = smul.addr %s482, 4
      %s487 = sadd.s32 %s485, %s486
      %s488 = smul.addr %s487, 4
      %s489 = scalar_lea.vmem %s3, %s488
      // Predicated region
      $region37: #{down_conv_forward.3} parent=31 // pred_check
        %p490 = pneg %p135
      $region38: #{down_conv_forward.3} parent=31 // pred_check_branch
        %492 = sbr.rel (%p490) target = $region40
      $region39: #{down_conv_forward.3} parent=31 // pred_region
        %s493 = smul.u32 2, %s20
      $region40: #{down_conv_forward.3} parent=31 // pred_fallthru
        _
    $region32: #{down_conv_forward.3} parent=5 // pred_fallthru
      _
    %p494 = scmp.le.s32.totalorder 2, %s9
    // Predicated region
    $region41: #{down_conv_forward.3} parent=5 // pred_check
      %p495 = pneg %p494
    $region42: #{down_conv_forward.3} parent=5 // pred_check_branch
      %497 = sbr.rel (%p495) target = $region44
    $region43: #{down_conv_forward.3} parent=5 // pred_region
      %s498 = ssub.s32 %s9, 2
      // Predicated region
      $region45: #{down_conv_forward.3} parent=43 // pred_check
        %p499 = pneg %p141
      $region46: #{down_conv_forward.3} parent=43 // pred_check_branch
        %501 = sbr.rel (%p499) target = $region48
      $region47: #{down_conv_forward.3} parent=43 // pred_region
        %s502 = smul.u32 2, %s23
        %p503 = scmp.lt.s32.totalorder %s22, 1
        %s504 = scalar_select %p503, %s22, 1
        %p505 = scmp.lt.s32.totalorder %s502, 1
        %s506 = scalar_select %p505, %s502, 1
        %s507 = smul.addr %s506, 2
        %s508 = smul.addr %s504, 4
        %s509 = sadd.s32 %s507, %s508
        %s510 = smul.addr %s509, 4
        %s511 = scalar_lea.vmem %s3, %s510
      $region48: #{down_conv_forward.3} parent=43 // pred_fallthru
        _
    $region44: #{down_conv_forward.3} parent=5 // pred_fallthru
      _
  $region6: #{down_conv_forward.3} parent=0 // loop_footer
    %s13 = sadd.s32 1, %s9
  $region7: #{down_conv_forward.3} parent=0 // loop_footer_branch
    %8 = sbr.rel target = $region3
  $region8: #{down_conv_forward.3} parent=0 // loop_exit
    _

</llo_original>
